<compile_context>
chip_gen: v7x
topology: tpu7x:2x2x1
jax: 0.10.0
libtpu: 0.0.40
codegen_flags: <defaults>
</compile_context>

<pallas_src>
import numpy as np
import jax
import jax.numpy as jnp
from jax.experimental import pallas as pl
from jax.experimental.pallas import tpu as pltpu

IMG_SIZE = (32, 32)
PATCH = 4
IN_CH = 3
EMBED_DIM = 128
NPH = IMG_SIZE[0] // PATCH
NPW = IMG_SIZE[1] // PATCH
NUM_PATCHES = NPH * NPW          # 64
K_PATCH = IN_CH * PATCH * PATCH  # 48
MAX_ROWS_PER_STEP = 1024         # 16 images/step; blocks stay ~1 MiB (fits v7x VMEM)


def patch_embed_kernel(xp_ref, w_ref, add_ref, o_ref):
    # xp_ref : (TM, K_PATCH)       rows = (image, patch) pairs of several images
    # w_ref  : (K_PATCH, D)        conv weight; constant block -> DMA'd once
    # add_ref: (NUM_PATCHES, D)    conv bias + positional encoding; constant block
    # o_ref  : (TM, D)
    tm = xp_ref.shape[0]
    imgs = tm // NUM_PATCHES      # static Python int at trace time
    acc = jnp.dot(xp_ref[...], w_ref[...], preferred_element_type=jnp.float32)
    if imgs == 1:
        o_ref[...] = acc + add_ref[...]
    else:
        # Broadcast the (64, D) add over the folded images: split the sublane
        # axis (multiple of 8, no relayout), VPU add is free under the DMA.
        acc = acc.reshape(imgs, NUM_PATCHES, EMBED_DIM) + add_ref[...][None]
        o_ref[...] = acc.reshape(tm, EMBED_DIM)


def make_radial_pe(d_model=EMBED_DIM, nph=NPH, npw=NPW):
    # PositionalEncoding2D(mode='radial') buffer (built once at init, like PyTorch).
    div = jnp.exp(jnp.arange(0, d_model, 2, dtype=jnp.float32)
                  * (-np.log(10000.0) / d_model))
    sin_h = jnp.sin(jnp.arange(nph, dtype=jnp.float32)[:, None] * div)  # (nph, d/2)
    cos_w = jnp.cos(jnp.arange(npw, dtype=jnp.float32)[:, None] * div)  # (npw, d/2)
    pe = jnp.zeros((nph, npw, d_model), dtype=jnp.float32)
    pe = pe.at[:, :, 0::2].set(sin_h[:, None, :])
    pe = pe.at[:, :, 1::2].set(cos_w[None, :, :])
    return pe.reshape(nph * npw, d_model)


def _imgs_per_step(batch):
    """Largest divisor of `batch` giving <= MAX_ROWS_PER_STEP rows per block,
    while keeping >= 2 grid steps when possible (balances v7x's two TCs)."""
    max_imgs = max(1, MAX_ROWS_PER_STEP // NUM_PATCHES)   # 16
    cap = min(max_imgs, max(1, batch // 2)) if batch >= 2 else max_imgs
    for d in range(min(cap, batch), 0, -1):
        if batch % d == 0:
            return d
    return 1


@jax.jit
def patch_embedding(x, conv_w, conv_b, pe):
    """x: (B, C, H, W); conv_w: (D, C, ps, ps); conv_b: (D,); pe: (P, D)."""
    B, C, H, W = x.shape
    D = conv_w.shape[0]
    imgs = _imgs_per_step(B)          # static under jit
    tm = imgs * NUM_PATCHES
    rows = B * NUM_PATCHES
    grid = (rows // tm,)

    # --- layout plumbing (trace time; patch gather may fuse into the call) ---
    # Non-overlapping patches, flattened in (c, ph, pw) order to match the
    # conv weight flattening below.  Row order is (b, ph, pw) = output order.
    xp = x.reshape(B, C, NPH, PATCH, NPW, PATCH)
    xp = xp.transpose(0, 2, 4, 1, 3, 5).reshape(rows, K_PATCH)
    # Conv weight (D, C, ps, ps) -> (C*ps*ps, D).
    w_mat = conv_w.reshape(D, K_PATCH).T
    # Fuse conv bias and positional encoding into one (64, D) add operand.
    add = pe + conv_b[None, :]

    cost = pl.CostEstimate(
        flops=2 * rows * K_PATCH * D,
        transcendentals=0,
        bytes_accessed=4 * (rows * K_PATCH + K_PATCH * D
                            + NUM_PATCHES * D + rows * D))

    out = pl.pallas_call(
        patch_embed_kernel,
        out_shape=jax.ShapeDtypeStruct((rows, D), jnp.float32),
        grid_spec=pltpu.PrefetchScalarGridSpec(
            num_scalar_prefetch=0,
            grid=grid,
            in_specs=[
                pl.BlockSpec((tm, K_PATCH), lambda i: (i, 0)),
                pl.BlockSpec((K_PATCH, D), lambda i: (0, 0)),
                pl.BlockSpec((NUM_PATCHES, D), lambda i: (0, 0)),
            ],
            out_specs=pl.BlockSpec((tm, D), lambda i: (i, 0)),
        ),
        compiler_params=pltpu.CompilerParams(
            dimension_semantics=("parallel",),
            allow_input_fusion=[True, False, False]),
        cost_estimate=cost,
    )(xp, w_mat, add)
    return out.reshape(B, NUM_PATCHES, D)


def reference(x, conv_w, conv_b, pe):
    # Independent reference: real conv -> flatten -> transpose -> + pe.
    y = jax.lax.conv_general_dilated(
        x, conv_w, window_strides=(PATCH, PATCH), padding="VALID",
        dimension_numbers=("NCHW", "OIHW", "NCHW"))
    y = y + conv_b[None, :, None, None]
    B, D, Hp, Wp = y.shape
    y = y.reshape(B, D, Hp * Wp).transpose(0, 2, 1)
    return y + pe[None]


if __name__ == "__main__":
    key = jax.random.PRNGKey(0)
    kx, kw, kb = jax.random.split(key, 3)
    B = 2
    x = jax.random.normal(kx, (B, IN_CH, IMG_SIZE[0], IMG_SIZE[1]),
                          dtype=jnp.float32)
    conv_w = (0.05 * jax.random.normal(kw, (EMBED_DIM, IN_CH, PATCH, PATCH))
              ).astype(jnp.float32)
    conv_b = (0.05 * jax.random.normal(kb, (EMBED_DIM,))).astype(jnp.float32)
    pe = make_radial_pe()   # 'radial' mode of PositionalEncoding2D

    out = patch_embedding(x, conv_w, conv_b, pe)
    out = jax.block_until_ready(out)

    ref = reference(x, conv_w, conv_b, pe)
    assert out.shape == (B, NUM_PATCHES, EMBED_DIM)
    assert jnp.allclose(out, ref, atol=1e-4, rtol=1e-4), "mismatch vs JAX reference"
    print("KERNEL_OK")
</pallas_src>

<mosaic_0001>
module attributes {stable_mosaic.version = 11 : i64} {
  func.func @patch_embed_kernel(%arg0: i32, %arg1: memref<64x48xf32, #tpu.memory_space<vmem>>, %arg2: memref<48x128xf32, #tpu.memory_space<vmem>>, %arg3: memref<64x128xf32, #tpu.memory_space<vmem>>, %arg4: memref<64x128xf32, #tpu.memory_space<vmem>>) attributes {dimension_semantics = [#tpu.dimension_semantics<parallel>], iteration_bounds = array<i64: 2>, scalar_prefetch = 0 : i64, scratch_operands = 0 : i64, tpu.core_type = #tpu.core_type<tc>, window_params = [{transform_indices = @transform_0, window_bounds = array<i64: 64, 48>}, {pipeline_mode = #tpu.pipeline_mode<synchronous>, transform_indices = @transform_1, window_bounds = array<i64: 48, 128>}, {pipeline_mode = #tpu.pipeline_mode<synchronous>, transform_indices = @transform_2, window_bounds = array<i64: 64, 128>}, {transform_indices = @transform_3, window_bounds = array<i64: 64, 128>}]} {
    %c0 = arith.constant 0 : index
    %c0_0 = arith.constant 0 : index
    %0 = vector.load %arg1[%c0, %c0_0] : memref<64x48xf32, #tpu.memory_space<vmem>>, vector<64x48xf32>
    %c0_1 = arith.constant 0 : index
    %c0_2 = arith.constant 0 : index
    %1 = vector.load %arg2[%c0_1, %c0_2] : memref<48x128xf32, #tpu.memory_space<vmem>>, vector<48x128xf32>
    %cst = arith.constant dense<0.000000e+00> : vector<64x128xf32>
    %2 = tpu.matmul %0, %1, %cst {dimension_numbers = #tpu.dot_dimension_numbers<[1], [0], [0], [1], [0, 0, 1, 1], [], []>} : vector<64x48xf32>, vector<48x128xf32>, vector<64x128xf32> -> vector<64x128xf32>
    %c0_3 = arith.constant 0 : index
    %c0_4 = arith.constant 0 : index
    %3 = vector.load %arg3[%c0_3, %c0_4] : memref<64x128xf32, #tpu.memory_space<vmem>>, vector<64x128xf32>
    %4 = arith.addf %2, %3 : vector<64x128xf32>
    %c0_5 = arith.constant 0 : index
    %c0_6 = arith.constant 0 : index
    %5 = vector.load %arg4[%c0_5, %c0_6] : memref<64x128xf32, #tpu.memory_space<vmem>>, vector<64x128xf32>
    tpu.vector_store %arg4[%c0_5, %c0_6], %4 {strides = array<i32>} : memref<64x128xf32, #tpu.memory_space<vmem>>, vector<64x128xf32>,
    return
  }
  func.func @transform_0(%arg0: i32) -> (i32, i32) {
    %c0_i32 = arith.constant 0 : i32
    %c0_i32_0 = arith.constant 0 : i32
    return %arg0, %c0_i32 : i32, i32
  }
  func.func @transform_1(%arg0: i32) -> (i32, i32) {
    %c0_i32 = arith.constant 0 : i32
    %c0_i32_0 = arith.constant 0 : i32
    %c0_i32_1 = arith.constant 0 : i32
    return %c0_i32, %c0_i32_0 : i32, i32
  }
  func.func @transform_2(%arg0: i32) -> (i32, i32) {
    %c0_i32 = arith.constant 0 : i32
    %c0_i32_0 = arith.constant 0 : i32
    %c0_i32_1 = arith.constant 0 : i32
    return %c0_i32, %c0_i32_0 : i32, i32
  }
  func.func @transform_3(%arg0: i32) -> (i32, i32) {
    %c0_i32 = arith.constant 0 : i32
    %c0_i32_0 = arith.constant 0 : i32
    return %arg0, %c0_i32 : i32, i32
  }
}

</mosaic_0001>

<llo_original>
// kernel: patch_embedding.1
$region0: #{patch_embedding.1}
  #allocation0 [shape = 'u32[]', space=smem, size = 0x4, offset = 0x4, fixed_abs, tag = 'smem constant byte address 0x4 - core index']
  #allocation1 [shape = 'u32[144,128]{1,0:T(1,128)}', space=vmem, size = 0x12000, scoped, tag = 'internal scratch']
  %s0 = inlined_call_operand.vmem [shape: f32[128,48], index: 0, kind: input, shape index: {}]
  %s1 = inlined_call_operand.vmem [shape: f32[48,128], index: 1, kind: input, shape index: {}]
  %s2 = inlined_call_operand.vmem [shape: f32[64,128], index: 2, kind: input, shape index: {}]
  %s3 = inlined_call_operand.hbm [shape: f32[128,128], index: 3, kind: output, shape index: {}]
  %s4 = sld [smem:[#allocation0]]
  $region45: #{patch_embedding.1} parent=0
    _
  %s6 = ssub.s32 1, %s4
  %s7 = scalar_select 0, %s6, %s4
  $region1: #{patch_embedding.1} parent=0
    #allocation2 [shape = 'u8[65536]{0}', space=vmem, size = 0x10000, scoped, tag = 'output window, operand 0']
    #allocation3 [shape = 's32[2]{0}', space=sflag, size = 0x8, scoped, tag = 'scoped memory for patch_embedding.1']
    %8 = vsyncpa [#allocation3], 0
    %s9 = scalar_lea.sflag [#allocation3], 1
    %10 = vsyncpa %s9, 0
    loop: start=0, step=1, limit=4
    $region2: #{patch_embedding.1} parent=1 // loop_pre_header
      _
    $region3: #{patch_embedding.1} parent=1 // loop_header
      %s12 = sphi 0, %s16
      %p13 = scmp.ge.s32.totalorder %s12, 4
      %s22 = sphi 0, %s24
      %s25 = sphi 0, %s22
      %s26 = sphi 0, %s25
      %s42 = sphi 0, %s26
      %s46 = sphi 0, %s46
      %s48 = sphi 0, %s46
      %s49 = sphi 0, %s48
      %s63 = sphi 0, %s49
      %s67 = sphi 0, %s67
      %s69 = sphi 0, %s67
      %s70 = sphi 0, %s69
      %s84 = sphi 0, %s70
      %s90 = sphi 0, %s92
      %s93 = sphi 0, %s90
      %s94 = sphi 0, %s93
      %s110 = sphi 0, %s94
    $region4: #{patch_embedding.1} parent=1 // loop_header_branch
      %15 = sbr.rel (%p13) target = $region8
    $region5: #{patch_embedding.1} parent=1 // loop_body
      %s17 = ssub.s32 %s12, 1
      %s18 = ssub.s32 %s12, 2
      %s19 = sadd.s32 %s12, 1
      %s20 = ssub.s32 %s12, %s19
      %p21 = scmp.eq.s32.totalorder %s20, 0
      %s23 = sadd.s32 %s22, 1
      %s24 = scalar_select %p21, %s22, %s23
      %p27 = pneg %p21
      %p28 = scmp.eq.s32.totalorder %s12, 1
      %p29 = por %p27, %p28
      %p30 = scmp.ne.s32.totalorder %s22, %s25
      %p31 = scmp.eq.s32.totalorder %s12, 0
      %p32 = por %p30, %p31
      %p33 = scmp.ne.s32.totalorder %s22, %s25
      %p34 = scmp.eq.s32.totalorder %s17, 1
      %p35 = por %p33, %p34
      %p36 = scmp.ne.s32.totalorder %s25, %s26
      %p37 = scmp.eq.s32.totalorder %s17, 0
      %p38 = por %p36, %p37
      %p39 = scmp.ne.s32.totalorder %s25, %s26
      %p40 = scmp.eq.s32.totalorder %s18, 1
      %p41 = por %p39, %p40
      %p43 = scmp.ne.s32.totalorder %s26, %s42
      %p44 = scmp.eq.s32.totalorder %s18, 0
      %p45 = por %p43, %p44
      %s47 = sadd.s32 %s46, 1
      %p50 = scmp.eq.s32.totalorder %s12, 1
      %p51 = scmp.ne.s32.totalorder %s46, %s48
      %p52 = scmp.eq.s32.totalorder %s12, 0
      %p53 = por %p51, %p52
      %p54 = scmp.ne.s32.totalorder %s46, %s48
      %p55 = scmp.eq.s32.totalorder %s17, 1
      %p56 = por %p54, %p55
      %p57 = scmp.ne.s32.totalorder %s48, %s49
      %p58 = scmp.eq.s32.totalorder %s17, 0
      %p59 = por %p57, %p58
      %p60 = scmp.ne.s32.totalorder %s48, %s49
      %p61 = scmp.eq.s32.totalorder %s18, 1
      %p62 = por %p60, %p61
      %p64 = scmp.ne.s32.totalorder %s49, %s63
      %p65 = scmp.eq.s32.totalorder %s18, 0
      %p66 = por %p64, %p65
      %s68 = sadd.s32 %s67, 1
      %p71 = scmp.eq.s32.totalorder %s12, 1
      %p72 = scmp.ne.s32.totalorder %s67, %s69
      %p73 = scmp.eq.s32.totalorder %s12, 0
      %p74 = por %p72, %p73
      %p75 = scmp.ne.s32.totalorder %s67, %s69
      %p76 = scmp.eq.s32.totalorder %s17, 1
      %p77 = por %p75, %p76
      %p78 = scmp.ne.s32.totalorder %s69, %s70
      %p79 = scmp.eq.s32.totalorder %s17, 0
      %p80 = por %p78, %p79
      %p81 = scmp.ne.s32.totalorder %s69, %s70
      %p82 = scmp.eq.s32.totalorder %s18, 1
      %p83 = por %p81, %p82
      %p85 = scmp.ne.s32.totalorder %s70, %s84
      %p86 = scmp.eq.s32.totalorder %s18, 0
      %p87 = por %p85, %p86
      %s88 = ssub.s32 %s12, %s19
      %p89 = scmp.eq.s32.totalorder %s88, 0
      %s91 = sadd.s32 %s90, 1
      %s92 = scalar_select %p89, %s90, %s91
      %p95 = pneg %p89
      %p96 = scmp.eq.s32.totalorder %s12, 1
      %p97 = por %p95, %p96
      %p98 = scmp.ne.s32.totalorder %s90, %s93
      %p99 = scmp.eq.s32.totalorder %s12, 0
      %p100 = por %p98, %p99
      %p101 = scmp.ne.s32.totalorder %s90, %s93
      %p102 = scmp.eq.s32.totalorder %s17, 1
      %p103 = por %p101, %p102
      %p104 = scmp.ne.s32.totalorder %s93, %s94
      %p105 = scmp.eq.s32.totalorder %s17, 0
      %p106 = por %p104, %p105
      %p107 = scmp.ne.s32.totalorder %s93, %s94
      %p108 = scmp.eq.s32.totalorder %s18, 1
      %p109 = por %p107, %p108
      %p111 = scmp.ne.s32.totalorder %s94, %s110
      %p112 = scmp.eq.s32.totalorder %s18, 0
      %p113 = por %p111, %p112
      %p114 = scmp.le.s32.totalorder 1, %s12
      %p115 = scmp.lt.s32.totalorder %s12, 3
      %p116 = pnand %p114, %p115
      %p117 = pneg %p116
      // Predicated region
      $region9: #{patch_embedding.1} parent=5 // pred_check
        _
      $region10: #{patch_embedding.1} parent=5 // pred_check_branch
        %119 = sbr.rel (%p116) target = $region12
      $region11: #{patch_embedding.1} parent=5 // pred_region
        %s120 = ssub.s32 %s12, 1
        // Predicated region
        $region13: #{patch_embedding.1} parent=11 // pred_check
          %p121 = pneg %p59
        $region14: #{patch_embedding.1} parent=11 // pred_check_branch
          %123 = sbr.rel (%p121) target = $region16
        $region15: #{patch_embedding.1} parent=11 // pred_region
          _
        $region16: #{patch_embedding.1} parent=11 // pred_fallthru
          _
        // Predicated region
        $region17: #{patch_embedding.1} parent=11 // pred_check
          %p124 = pneg %p80
        $region18: #{patch_embedding.1} parent=11 // pred_check_branch
          %126 = sbr.rel (%p124) target = $region20
        $region19: #{patch_embedding.1} parent=11 // pred_region
          _
        $region20: #{patch_embedding.1} parent=11 // pred_fallthru
          _
      $region12: #{patch_embedding.1} parent=5 // pred_fallthru
        _
      %p127 = scmp.lt.s32.totalorder %s12, 2
      // Predicated region
      $region21: #{patch_embedding.1} parent=5 // pred_check
        %p128 = pneg %p127
      $region22: #{patch_embedding.1} parent=5 // pred_check_branch
        %130 = sbr.rel (%p128) target = $region24
      $region23: #{patch_embedding.1} parent=5 // pred_region
        // Predicated region
        $region25: #{patch_embedding.1} parent=23 // pred_check
          %p131 = pneg %p32
        $region26: #{patch_embedding.1} parent=23 // pred_check_branch
          %133 = sbr.rel (%p131) target = $region28
        $region27: #{patch_embedding.1} parent=23 // pred_region
          %s134 = smul.u32 8, %s12
          %p135 = scmp.lt.s32.totalorder %s134, 15
          %s136 = scalar_select %p135, %s134, 15
          %s137 = smul.addr %s136, 8
          %s138 = scalar_lea.vmem %s0, %s137
          %s139 = smul.u32 8, %s12
        $region28: #{patch_embedding.1} parent=23 // pred_fallthru
          _
      $region24: #{patch_embedding.1} parent=5 // pred_fallthru
        _
      %p140 = scmp.le.s32.totalorder 1, %s12
      %p141 = scmp.lt.s32.totalorder %s12, 3
      %p142 = pnand %p140, %p141
      %p143 = pneg %p142
      // Predicated region
      $region29: #{patch_embedding.1} parent=5 // pred_check
        _
      $region30: #{patch_embedding.1} parent=5 // pred_check_branch
        %145 = sbr.rel (%p142) target = $region32
      $region31: #{patch_embedding.1} parent=5 // pred_region
        %s146 = ssub.s32 %s12, 1
        %s147 = smul.u32 8, %s17
        %p148 = scmp.lt.s32.totalorder %s147, 15
        %s149 = scalar_select %p148, %s147, 15
        %s150 = smul.addr %s149, 8
        %s151 = scalar_lea.vmem %s0, %s150
        %p152 = pneg %p38
        %p153 = pneg %p35
        %p154 = pneg %p59
        %p155 = pneg %p56
        %p156 = pneg %p80
        %p157 = pneg %p77
        %p158 = pneg %p106
        %p159 = pneg %p103
        %s160 = sand.u32 %s93, 1
        %s161 = scalar_lea.sflag [#allocation3], %s160
        %s162 = sand.u32 %s93, 1
        %s163 = smul.addr %s162, 64
        %s164 = scalar_lea.vmem [#allocation2], %s163
        %s165 = smul.u32 8, %s17
        %p166 = scmp.lt.s32.totalorder %s165, 15
        %s167 = scalar_select %p166, %s165, 15
        %s168 = smul.addr %s167, 8
        %s169 = scalar_lea.vmem %s0, %s168
        %s170 = smul.u32 8, %s17
        %s171 = smul.u32 8, %s17
        %v172 = vld [vmem:[%s169] sm:$0xff]
        %v173 = vld [vmem:[%s169 + $0x8] sm:$0xff]
        %v174 = vld [vmem:[%s169 + $0x10] sm:$0xff]
        %v175 = vld [vmem:[%s169 + $0x18] sm:$0xff]
        %v176 = vld [vmem:[%s169 + $0x20] sm:$0xff]
        %v177 = vld [vmem:[%s169 + $0x28] sm:$0xff]
        %v178 = vld [vmem:[%s169 + $0x30] sm:$0xff]
        %v179 = vld [vmem:[%s169 + $0x38] sm:$0xff]
        %v180 = vld [vmem:[%s1] sm:$0xff]
        %v181 = vld [vmem:[%s1 + $0x8] sm:$0xff]
        %v182 = vld [vmem:[%s1 + $0x10] sm:$0xff]
        %v183 = vld [vmem:[%s1 + $0x18] sm:$0xff]
        %v184 = vld [vmem:[%s1 + $0x20] sm:$0xff]
        %v185 = vld [vmem:[%s1 + $0x28] sm:$0xff]
        %v186 = vld [vmem:[%s2] sm:$0xff]
        %v187 = vld [vmem:[%s2 + $0x8] sm:$0xff]
        %v188 = vld [vmem:[%s2 + $0x10] sm:$0xff]
        %v189 = vld [vmem:[%s2 + $0x18] sm:$0xff]
        %v190 = vld [vmem:[%s2 + $0x20] sm:$0xff]
        %v191 = vld [vmem:[%s2 + $0x28] sm:$0xff]
        %v192 = vld [vmem:[%s2 + $0x30] sm:$0xff]
        %v193 = vld [vmem:[%s2 + $0x38] sm:$0xff]
        %vm194 = vcmask 392192
        %v196 = vsel %vm194, %v172, 0
        %v199 = vsel %vm194, %v173, 0
        %v202 = vsel %vm194, %v174, 0
        %v205 = vsel %vm194, %v175, 0
        %v208 = vsel %vm194, %v176, 0
        %v211 = vsel %vm194, %v177, 0
        %v214 = vsel %vm194, %v178, 0
        %v217 = vsel %vm194, %v179, 0
        %219 = vmatprep.subr.mxu0 0.0
        %220 = vmatpush1.msra.mxu0 %v180
        %221 = vmatprep.subr.mxu0 0.0
        %222 = vmatpush1.msra.mxu0 %v181
        %223 = vmatprep.subr.mxu0 0.0
        %224 = vmatpush1.msra.mxu0 %v182
        %225 = vmatprep.subr.mxu0 0.0
        %226 = vmatpush1.msra.mxu0 %v183
        %227 = vmatprep.subr.mxu0 0.0
        %228 = vmatpush1.msra.mxu0 %v184
        %229 = vmatprep.subr.mxu0 0.0
        %230 = vmatpush1.msra.mxu0 %v185
        %231 = vmatprep.subr.mxu0 0.0
        %232 = vmatpush1.msra.mxu0 0.0
        %233 = vmatprep.subr.mxu0 0.0
        %234 = vmatpush1.msra.mxu0 0.0
        %235 = vmatprep.subr.mxu0 0.0
        %236 = vmatpush1.msra.mxu0 0.0
        %237 = vmatprep.subr.mxu0 0.0
        %238 = vmatpush1.msra.mxu0 0.0
        %239 = vmatprep.subr.mxu0 0.0
        %240 = vmatpush1.msra.mxu0 0.0
        %241 = vmatprep.subr.mxu0 0.0
        %242 = vmatpush1.msra.mxu0 0.0
        %243 = vmatprep.subr.mxu0 0.0
        %244 = vmatpush1.msra.mxu0 0.0
        %245 = vmatprep.subr.mxu0 0.0
        %246 = vmatpush1.msra.mxu0 0.0
        %247 = vmatprep.subr.mxu0 0.0
        %248 = vmatpush1.msra.mxu0 0.0
        %249 = vmatprep.subr.mxu0 0.0
        %250 = vmatpush1.msra.mxu0 0.0
        %251 = vmatprep.subr.mxu0 0.0
        %252 = vmatpush1.msra.mxu0 0.0
        %253 = vmatprep.subr.mxu0 0.0
        %254 = vmatpush1.msra.mxu0 0.0
        %255 = vmatprep.subr.mxu0 0.0
        %256 = vmatpush1.msra.mxu0 0.0
        %257 = vmatprep.subr.mxu0 0.0
        %258 = vmatpush1.msra.mxu0 0.0
        %259 = vmatprep.subr.mxu0 0.0
        %260 = vmatpush1.msra.mxu0 0.0
        %261 = vmatprep.subr.mxu0 0.0
        %262 = vmatpush1.msra.mxu0 0.0
        %263 = vmatprep.subr.mxu0 0.0
        %264 = vmatpush1.msra.mxu0 0.0
        %265 = vmatprep.subr.mxu0 0.0
        %266 = vmatpush1.msra.mxu0 0.0
        %267 = vmatprep.subr.mxu0 0.0
        %268 = vmatpush1.msra.mxu0 0.0
        %269 = vmatprep.subr.mxu0 0.0
        %270 = vmatpush1.msra.mxu0 0.0
        %271 = vmatprep.subr.mxu0 0.0
        %272 = vmatpush1.msra.mxu0 0.0
        %273 = vmatprep.subr.mxu0 0.0
        %274 = vmatpush1.msra.mxu0 0.0
        %275 = vmatprep.subr.mxu0 0.0
        %276 = vmatpush1.msra.mxu0 0.0
        %277 = vmatprep.subr.mxu0 0.0
        %278 = vmatpush1.msra.mxu0 0.0
        %279 = vmatprep.subr.mxu0 0.0
        %280 = vmatpush1.msra.mxu0 0.0
        %281 = vmatprep.subr.mxu0 0.0
        %282 = vmatpush1.msra.mxu0 0.0
        %283 = vmatprep.mubr.f32.mxu0 0.0
        %284 = vmatmul.mubr.f32.gmra.mrb[0].mxu0 %v196
        %v285 = vpop.f32.mrb[0].mxu0
        %v286 = vadd.f32 %v186, %v285
        %v287 = vpop.f32.mrb[0].mxu0
        %288 = vmatprep.mubr.f32.mxu0 0.0
        %289 = vmatmul.mubr.f32.gmra.mrb[0].mxu0 %v199
        %v290 = vpop.f32.mrb[0].mxu0
        %v291 = vadd.f32 %v187, %v290
        %v292 = vpop.f32.mrb[0].mxu0
        %293 = vmatprep.mubr.f32.mxu0 0.0
        %294 = vmatmul.mubr.f32.gmra.mrb[0].mxu0 %v202
        %v295 = vpop.f32.mrb[0].mxu0
        %v296 = vadd.f32 %v188, %v295
        %v297 = vpop.f32.mrb[0].mxu0
        %298 = vmatprep.mubr.f32.mxu0 0.0
        %299 = vmatmul.mubr.f32.gmra.mrb[0].mxu0 %v205
        %v300 = vpop.f32.mrb[0].mxu0
        %v301 = vadd.f32 %v189, %v300
        %v302 = vpop.f32.mrb[0].mxu0
        %303 = vmatprep.mubr.f32.mxu0 0.0
        %304 = vmatmul.mubr.f32.gmra.mrb[0].mxu0 %v208
        %v305 = vpop.f32.mrb[0].mxu0
        %v306 = vadd.f32 %v190, %v305
        %v307 = vpop.f32.mrb[0].mxu0
        %308 = vmatprep.mubr.f32.mxu0 0.0
        %309 = vmatmul.mubr.f32.gmra.mrb[0].mxu0 %v211
        %v310 = vpop.f32.mrb[0].mxu0
        %v311 = vadd.f32 %v191, %v310
        %v312 = vpop.f32.mrb[0].mxu0
        %313 = vmatprep.mubr.f32.mxu0 0.0
        %314 = vmatmul.mubr.f32.gmra.mrb[0].mxu0 %v214
        %v315 = vpop.f32.mrb[0].mxu0
        %v316 = vadd.f32 %v192, %v315
        %v317 = vpop.f32.mrb[0].mxu0
        %318 = vmatprep.mubr.f32.mxu0 0.0
        %319 = vmatmul.mubr.f32.gmra.mrb[0].mxu0 %v217
        %v320 = vpop.f32.mrb[0].mxu0
        %v321 = vadd.f32 %v193, %v320
        %v322 = vpop.f32.mrb[0].mxu0
        %323 = vdwg.mxu0
        %324 = vst [vmem:[%s164] sm:$0xff] %v286
        %325 = vst [vmem:[%s164 + $0x8] sm:$0xff] %v291
        %326 = vst [vmem:[%s164 + $0x10] sm:$0xff] %v296
        %327 = vst [vmem:[%s164 + $0x18] sm:$0xff] %v301
        %328 = vst [vmem:[%s164 + $0x20] sm:$0xff] %v306
        %329 = vst [vmem:[%s164 + $0x28] sm:$0xff] %v311
        %330 = vst [vmem:[%s164 + $0x30] sm:$0xff] %v316
        %331 = vst [vmem:[%s164 + $0x38] sm:$0xff] %v321
        %s332 = sand.u32 %s93, 1
        %s333 = scalar_lea.sflag [#allocation3], %s332
        %s334 = sand.u32 %s93, 1
        %s335 = smul.addr %s334, 64
        %s336 = scalar_lea.vmem [#allocation2], %s335
        // Predicated region
        $region33: #{patch_embedding.1} parent=31 // pred_check
          %p337 = pneg %p103
        $region34: #{patch_embedding.1} parent=31 // pred_check_branch
          %339 = sbr.rel (%p337) target = $region36
        $region35: #{patch_embedding.1} parent=31 // pred_region
          %s340 = smul.u32 8, %s17
          %s342 = ssub.s32 1024, 1024
          %343 = vsyncadd %s333, %s342
          %s344 = smul.addr %s340, 128
          %s345 = scalar_lea.hbm %s3, %s344
          %s346 = sshll.u32 %s336, 4
          %s347 = int_to_ptr.vmem [resolvable:$true] %s346
          %352 = dma.vmem_to_hbm [thread:$0]  %s347, 1024, %s345, %s333, 128, 128, 8
        $region36: #{patch_embedding.1} parent=31 // pred_fallthru
          _
      $region32: #{patch_embedding.1} parent=5 // pred_fallthru
        _
      %p353 = scmp.le.s32.totalorder 2, %s12
      // Predicated region
      $region37: #{patch_embedding.1} parent=5 // pred_check
        %p354 = pneg %p353
      $region38: #{patch_embedding.1} parent=5 // pred_check_branch
        %356 = sbr.rel (%p354) target = $region40
      $region39: #{patch_embedding.1} parent=5 // pred_region
        %s357 = ssub.s32 %s12, 2
        // Predicated region
        $region41: #{patch_embedding.1} parent=39 // pred_check
          %p358 = pneg %p109
        $region42: #{patch_embedding.1} parent=39 // pred_check_branch
          %360 = sbr.rel (%p358) target = $region44
        $region43: #{patch_embedding.1} parent=39 // pred_region
          %s361 = sand.u32 %s94, 1
          %s362 = scalar_lea.sflag [#allocation3], %s361
          %s363 = sand.u32 %s94, 1
          %s364 = smul.addr %s363, 64
          %s365 = scalar_lea.vmem [#allocation2], %s364
          %366 = dma.done %s362, 1024
        $region44: #{patch_embedding.1} parent=39 // pred_fallthru
          _
      $region40: #{patch_embedding.1} parent=5 // pred_fallthru
        _
    $region6: #{patch_embedding.1} parent=1 // loop_footer
      %s16 = sadd.s32 1, %s12
    $region7: #{patch_embedding.1} parent=1 // loop_footer_branch
      %11 = sbr.rel target = $region3
    $region8: #{patch_embedding.1} parent=1 // loop_exit
      _
    %367 = vsyncpa [#allocation3], 1
    %s368 = scalar_lea.sflag [#allocation3], 1
    %369 = vsyncpa %s368, 1

</llo_original>
